<compile_context>
chip_gen: v7x
topology: tpu7x:2x2x1
jax: 0.10.0
libtpu: 0.0.40
codegen_flags: <defaults>
</compile_context>

<pallas_src>
import functools

import jax
import jax.numpy as jnp
from jax import lax
from jax.experimental import pallas as pl
from jax.experimental.pallas import tpu as pltpu

UNK_IDX = 0      # ScriptVocabulary unk index (deterministic synthetic choice)
LANES = 128


def _round_up(x: int, m: int) -> int:
    return ((x + m - 1) // m) * m


def _cdiv(a: int, b: int) -> int:
    return -(-a // b)


def _vocab_lookup_kernel(vocab_smem, tokens_ref, out_ref, *,
                         v_size, v_pad, unroll, sub_rows):
    """vocab_smem: [v_pad] int32 SMEM; tokens_ref/out_ref: [rt, 128] int32 VMEM."""
    rt, lanes = tokens_ref.shape
    n_sub = rt // sub_rows
    n_steps = v_pad // unroll        # vocab scan steps (manual unroll inside)

    def scan_vocab(toks, acc):
        # Descending j scan with overwrite: final value = lowest matching j
        # (first match).  Padded slots (j >= v_size, code 0) come first and
        # are overwritten by any real match.
        def vbody(jb, acc):
            base = v_pad - 1 - jb * unroll
            for u in range(unroll):  # manual unroll: SMEM loads co-issue with VALU
                j = base - u
                code = vocab_smem[j]
                acc = jnp.where(toks == code, j, acc)   # 2 VALU ops per code
            return acc

        if n_steps == 1:             # tiny vocab: fully unrolled, static indices
            return vbody(0, acc)
        return lax.fori_loop(0, n_steps, vbody, acc)

    def sub_body(s, carry):
        # 64-row sub-chunk: tokens + accumulator stay register-resident for the
        # whole vocab scan (~16 live vregs) -> no spills at large row tiles.
        r0 = pl.multiple_of(s * sub_rows, sub_rows)
        toks = tokens_ref[pl.ds(r0, sub_rows), :]
        acc0 = jnp.full((sub_rows, lanes), v_pad, dtype=jnp.int32)   # sentinel
        first = scan_vocab(toks, acc0)
        # No match, or match against a padded vocab slot (index >= v_size) -> UNK.
        out_ref[pl.ds(r0, sub_rows), :] = jnp.where(
            first < v_size, first, jnp.int32(UNK_IDX)).astype(jnp.int32)
        return carry

    lax.fori_loop(0, n_sub, sub_body, 0)


def vocab_transform(tokens: jnp.ndarray, vocab_codes: jnp.ndarray,
                    *, row_tile: int = 512, sub_rows: int = 64,
                    unroll: int = 8) -> jnp.ndarray:
    """tokens: [B, S] int32 token codes; vocab_codes: [V] int32 codes -> [B, S] int32 indices."""
    tokens = tokens.astype(jnp.int32)
    B, S = tokens.shape
    n = B * S

    # ---- vocab table -> SMEM (scalar prefetch), zero-padded to a multiple of unroll ----
    V = int(vocab_codes.shape[0])
    unroll = max(1, int(unroll))
    v_pad = _round_up(max(V, 1), unroll)
    unroll_eff = v_pad if v_pad <= 64 else unroll       # fully unroll tiny vocabs
    vocab_padded = jnp.zeros((v_pad,), jnp.int32).at[:V].set(
        vocab_codes.astype(jnp.int32))
    # TODO(synk): for production-size vocabularies, chunk the table across a
    # trailing "arbitrary" grid axis (or build a host-side dense/perfect-hash
    # code->index table) instead of holding the whole table in SMEM.

    # ---- lane-dense token layout: [B,S] -> [rows_pad, 128] ----
    rows = max(1, _cdiv(n, LANES))
    rows8 = _round_up(rows, 8)
    sr = max(8, min(_round_up(sub_rows, 8), rows8))           # sub-chunk rows (mult of 8)
    rt = min(_round_up(row_tile, sr), _round_up(rows8, sr))   # row tile (mult of sr)
    rows_pad = _round_up(rows8, rt)
    # v7x megacore: keep >= 2 grid steps along the "parallel" axis when possible.
    if rows_pad // rt < 2 and rt > sr:
        rt = max(sr, _round_up(_cdiv(rows_pad, 2), sr))
        rows_pad = _round_up(rows8, rt)

    flat = jnp.zeros((rows_pad * LANES,), jnp.int32).at[:n].set(tokens.reshape(-1))
    tok2d = flat.reshape(rows_pad, LANES)

    kernel = functools.partial(_vocab_lookup_kernel, v_size=V, v_pad=v_pad,
                               unroll=unroll_eff, sub_rows=sr)

    out2d = pl.pallas_call(
        kernel,
        out_shape=jax.ShapeDtypeStruct((rows_pad, LANES), jnp.int32),
        grid_spec=pltpu.PrefetchScalarGridSpec(
            num_scalar_prefetch=1,                  # vocab -> SMEM, resident for all tiles
            grid=(rows_pad // rt,),
            in_specs=[pl.BlockSpec((rt, LANES), lambda i, vocab: (i, 0))],
            out_specs=pl.BlockSpec((rt, LANES), lambda i, vocab: (i, 0)),
        ),
        compiler_params=pltpu.CompilerParams(
            dimension_semantics=("parallel",)),
    )(vocab_padded, tok2d)

    return out2d.reshape(-1)[:n].reshape(B, S)


def _reference(tokens, vocab_codes, unk_idx=UNK_IDX):
    """Pure-JAX first-match lookup with OOV -> unk_idx."""
    V = vocab_codes.shape[0]
    cmp = tokens[:, :, None] == vocab_codes[None, None, :]
    first = jnp.min(
        jnp.where(cmp, jnp.arange(V, dtype=jnp.int32)[None, None, :], jnp.int32(V)),
        axis=-1)
    return jnp.where(first == V, jnp.int32(unk_idx), first)


if __name__ == "__main__":
    key = jax.random.PRNGKey(0)
    k1, k2, k3, k4 = jax.random.split(key, 4)

    # --- Test 1: small shapes per module (batch=2, seq=8, vocab=32) ---
    # Synthetic deterministic "vocabulary": V entries, each with a unique int32 code.
    V = 32
    B, S = 2, 8
    vocab_codes = jnp.arange(V, dtype=jnp.int32) * 7 + 3        # codes: 3, 10, 17, ...
    in_vocab_ids = jax.random.randint(k1, (B, S), 0, V)
    in_vocab_codes = vocab_codes[in_vocab_ids]
    oov_mask = jax.random.bernoulli(k2, p=0.25, shape=(B, S))   # 25% OOV
    tokens = jnp.where(oov_mask, jnp.int32(999_999), in_vocab_codes).astype(jnp.int32)

    out = jax.block_until_ready(vocab_transform(tokens, vocab_codes))
    ref = _reference(tokens, vocab_codes)
    assert jnp.array_equal(out, ref), (out, ref)

    # --- Test 2: exercises multi-tile grid, 64-row sub-chunk loop, chunked
    #     (non-unrolled) vocab scan, padded vocab slots and duplicate codes. ---
    V2 = 203
    B2, S2 = 16, 2048
    codes2 = jnp.arange(V2, dtype=jnp.int32) * 5 + 2
    codes2 = codes2.at[50].set(codes2[10])                      # duplicate -> first-match check
    ids2 = jax.random.randint(k3, (B2, S2), 0, V2)
    toks2 = codes2[ids2]
    sel = jax.random.randint(k4, (B2, S2), 0, 8)
    tokens2 = jnp.where(sel == 0, jnp.int32(999_999),           # OOV large code
              jnp.where(sel == 1, jnp.int32(0), toks2)          # OOV code 0 (hits padded slots)
              ).astype(jnp.int32)

    out2 = jax.block_until_ready(vocab_transform(tokens2, codes2))
    ref2 = _reference(tokens2, codes2)
    assert jnp.array_equal(out2, ref2)

    # TODO(synk): string tokenization / fairseq vocab-file parsing has no TPU
    # equivalent; tokens must be pre-encoded to int32 codes on the host.
    print("KERNEL_OK")
</pallas_src>

<mosaic_0001>
module attributes {stable_mosaic.version = 11 : i64} {
  func.func @_vocab_lookup_kernel(%arg0: i32, %arg1: memref<32xi32, #tpu.memory_space<smem>>, %arg2: memref<8x128xi32, #tpu.memory_space<vmem>>, %arg3: memref<8x128xi32, #tpu.memory_space<vmem>>) attributes {dimension_semantics = [#tpu.dimension_semantics<parallel>], iteration_bounds = array<i64: 1>, scalar_prefetch = 1 : i64, scratch_operands = 0 : i64, tpu.core_type = #tpu.core_type<tc>, window_params = [{transform_indices = @transform_0, window_bounds = array<i64: 8, 128>}, {transform_indices = @transform_1, window_bounds = array<i64: 8, 128>}]} {
    %c0_i32 = arith.constant 0 : i32
    %c8_i32 = arith.constant 8 : i32
    %0 = arith.muli %c0_i32, %c8_i32 : i32
    %1 = tpu.assume_multiple %0, 8 : i32
    %2 = arith.index_cast %1 : i32 to index
    %c0 = arith.constant 0 : index
    %3 = vector.load %arg2[%2, %c0] : memref<8x128xi32, #tpu.memory_space<vmem>>, vector<8x128xi32>
    %c32_i32 = arith.constant 32 : i32
    %4 = vector.broadcast %c32_i32 : i32 to vector<8x128xi32>
    %c31 = arith.constant 31 : index
    %5 = memref.load %arg1[%c31] : memref<32xi32, #tpu.memory_space<smem>>
    %6 = vector.broadcast %5 : i32 to vector<8x128xi32>
    %7 = arith.cmpi eq, %3, %6 : vector<8x128xi32>
    %c31_i32 = arith.constant 31 : i32
    %8 = vector.broadcast %c31_i32 : i32 to vector<8x128xi32>
    %9 = arith.select %7, %8, %4 : vector<8x128xi1>, vector<8x128xi32>
    %c30 = arith.constant 30 : index
    %10 = memref.load %arg1[%c30] : memref<32xi32, #tpu.memory_space<smem>>
    %11 = vector.broadcast %10 : i32 to vector<8x128xi32>
    %12 = arith.cmpi eq, %3, %11 : vector<8x128xi32>
    %c30_i32 = arith.constant 30 : i32
    %13 = vector.broadcast %c30_i32 : i32 to vector<8x128xi32>
    %14 = arith.select %12, %13, %9 : vector<8x128xi1>, vector<8x128xi32>
    %c29 = arith.constant 29 : index
    %15 = memref.load %arg1[%c29] : memref<32xi32, #tpu.memory_space<smem>>
    %16 = vector.broadcast %15 : i32 to vector<8x128xi32>
    %17 = arith.cmpi eq, %3, %16 : vector<8x128xi32>
    %c29_i32 = arith.constant 29 : i32
    %18 = vector.broadcast %c29_i32 : i32 to vector<8x128xi32>
    %19 = arith.select %17, %18, %14 : vector<8x128xi1>, vector<8x128xi32>
    %c28 = arith.constant 28 : index
    %20 = memref.load %arg1[%c28] : memref<32xi32, #tpu.memory_space<smem>>
    %21 = vector.broadcast %20 : i32 to vector<8x128xi32>
    %22 = arith.cmpi eq, %3, %21 : vector<8x128xi32>
    %c28_i32 = arith.constant 28 : i32
    %23 = vector.broadcast %c28_i32 : i32 to vector<8x128xi32>
    %24 = arith.select %22, %23, %19 : vector<8x128xi1>, vector<8x128xi32>
    %c27 = arith.constant 27 : index
    %25 = memref.load %arg1[%c27] : memref<32xi32, #tpu.memory_space<smem>>
    %26 = vector.broadcast %25 : i32 to vector<8x128xi32>
    %27 = arith.cmpi eq, %3, %26 : vector<8x128xi32>
    %c27_i32 = arith.constant 27 : i32
    %28 = vector.broadcast %c27_i32 : i32 to vector<8x128xi32>
    %29 = arith.select %27, %28, %24 : vector<8x128xi1>, vector<8x128xi32>
    %c26 = arith.constant 26 : index
    %30 = memref.load %arg1[%c26] : memref<32xi32, #tpu.memory_space<smem>>
    %31 = vector.broadcast %30 : i32 to vector<8x128xi32>
    %32 = arith.cmpi eq, %3, %31 : vector<8x128xi32>
    %c26_i32 = arith.constant 26 : i32
    %33 = vector.broadcast %c26_i32 : i32 to vector<8x128xi32>
    %34 = arith.select %32, %33, %29 : vector<8x128xi1>, vector<8x128xi32>
    %c25 = arith.constant 25 : index
    %35 = memref.load %arg1[%c25] : memref<32xi32, #tpu.memory_space<smem>>
    %36 = vector.broadcast %35 : i32 to vector<8x128xi32>
    %37 = arith.cmpi eq, %3, %36 : vector<8x128xi32>
    %c25_i32 = arith.constant 25 : i32
    %38 = vector.broadcast %c25_i32 : i32 to vector<8x128xi32>
    %39 = arith.select %37, %38, %34 : vector<8x128xi1>, vector<8x128xi32>
    %c24 = arith.constant 24 : index
    %40 = memref.load %arg1[%c24] : memref<32xi32, #tpu.memory_space<smem>>
    %41 = vector.broadcast %40 : i32 to vector<8x128xi32>
    %42 = arith.cmpi eq, %3, %41 : vector<8x128xi32>
    %c24_i32 = arith.constant 24 : i32
    %43 = vector.broadcast %c24_i32 : i32 to vector<8x128xi32>
    %44 = arith.select %42, %43, %39 : vector<8x128xi1>, vector<8x128xi32>
    %c23 = arith.constant 23 : index
    %45 = memref.load %arg1[%c23] : memref<32xi32, #tpu.memory_space<smem>>
    %46 = vector.broadcast %45 : i32 to vector<8x128xi32>
    %47 = arith.cmpi eq, %3, %46 : vector<8x128xi32>
    %c23_i32 = arith.constant 23 : i32
    %48 = vector.broadcast %c23_i32 : i32 to vector<8x128xi32>
    %49 = arith.select %47, %48, %44 : vector<8x128xi1>, vector<8x128xi32>
    %c22 = arith.constant 22 : index
    %50 = memref.load %arg1[%c22] : memref<32xi32, #tpu.memory_space<smem>>
    %51 = vector.broadcast %50 : i32 to vector<8x128xi32>
    %52 = arith.cmpi eq, %3, %51 : vector<8x128xi32>
    %c22_i32 = arith.constant 22 : i32
    %53 = vector.broadcast %c22_i32 : i32 to vector<8x128xi32>
    %54 = arith.select %52, %53, %49 : vector<8x128xi1>, vector<8x128xi32>
    %c21 = arith.constant 21 : index
    %55 = memref.load %arg1[%c21] : memref<32xi32, #tpu.memory_space<smem>>
    %56 = vector.broadcast %55 : i32 to vector<8x128xi32>
    %57 = arith.cmpi eq, %3, %56 : vector<8x128xi32>
    %c21_i32 = arith.constant 21 : i32
    %58 = vector.broadcast %c21_i32 : i32 to vector<8x128xi32>
    %59 = arith.select %57, %58, %54 : vector<8x128xi1>, vector<8x128xi32>
    %c20 = arith.constant 20 : index
    %60 = memref.load %arg1[%c20] : memref<32xi32, #tpu.memory_space<smem>>
    %61 = vector.broadcast %60 : i32 to vector<8x128xi32>
    %62 = arith.cmpi eq, %3, %61 : vector<8x128xi32>
    %c20_i32 = arith.constant 20 : i32
    %63 = vector.broadcast %c20_i32 : i32 to vector<8x128xi32>
    %64 = arith.select %62, %63, %59 : vector<8x128xi1>, vector<8x128xi32>
    %c19 = arith.constant 19 : index
    %65 = memref.load %arg1[%c19] : memref<32xi32, #tpu.memory_space<smem>>
    %66 = vector.broadcast %65 : i32 to vector<8x128xi32>
    %67 = arith.cmpi eq, %3, %66 : vector<8x128xi32>
    %c19_i32 = arith.constant 19 : i32
    %68 = vector.broadcast %c19_i32 : i32 to vector<8x128xi32>
    %69 = arith.select %67, %68, %64 : vector<8x128xi1>, vector<8x128xi32>
    %c18 = arith.constant 18 : index
    %70 = memref.load %arg1[%c18] : memref<32xi32, #tpu.memory_space<smem>>
    %71 = vector.broadcast %70 : i32 to vector<8x128xi32>
    %72 = arith.cmpi eq, %3, %71 : vector<8x128xi32>
    %c18_i32 = arith.constant 18 : i32
    %73 = vector.broadcast %c18_i32 : i32 to vector<8x128xi32>
    %74 = arith.select %72, %73, %69 : vector<8x128xi1>, vector<8x128xi32>
    %c17 = arith.constant 17 : index
    %75 = memref.load %arg1[%c17] : memref<32xi32, #tpu.memory_space<smem>>
    %76 = vector.broadcast %75 : i32 to vector<8x128xi32>
    %77 = arith.cmpi eq, %3, %76 : vector<8x128xi32>
    %c17_i32 = arith.constant 17 : i32
    %78 = vector.broadcast %c17_i32 : i32 to vector<8x128xi32>
    %79 = arith.select %77, %78, %74 : vector<8x128xi1>, vector<8x128xi32>
    %c16 = arith.constant 16 : index
    %80 = memref.load %arg1[%c16] : memref<32xi32, #tpu.memory_space<smem>>
    %81 = vector.broadcast %80 : i32 to vector<8x128xi32>
    %82 = arith.cmpi eq, %3, %81 : vector<8x128xi32>
    %c16_i32 = arith.constant 16 : i32
    %83 = vector.broadcast %c16_i32 : i32 to vector<8x128xi32>
    %84 = arith.select %82, %83, %79 : vector<8x128xi1>, vector<8x128xi32>
    %c15 = arith.constant 15 : index
    %85 = memref.load %arg1[%c15] : memref<32xi32, #tpu.memory_space<smem>>
    %86 = vector.broadcast %85 : i32 to vector<8x128xi32>
    %87 = arith.cmpi eq, %3, %86 : vector<8x128xi32>
    %c15_i32 = arith.constant 15 : i32
    %88 = vector.broadcast %c15_i32 : i32 to vector<8x128xi32>
    %89 = arith.select %87, %88, %84 : vector<8x128xi1>, vector<8x128xi32>
    %c14 = arith.constant 14 : index
    %90 = memref.load %arg1[%c14] : memref<32xi32, #tpu.memory_space<smem>>
    %91 = vector.broadcast %90 : i32 to vector<8x128xi32>
    %92 = arith.cmpi eq, %3, %91 : vector<8x128xi32>
    %c14_i32 = arith.constant 14 : i32
    %93 = vector.broadcast %c14_i32 : i32 to vector<8x128xi32>
    %94 = arith.select %92, %93, %89 : vector<8x128xi1>, vector<8x128xi32>
    %c13 = arith.constant 13 : index
    %95 = memref.load %arg1[%c13] : memref<32xi32, #tpu.memory_space<smem>>
    %96 = vector.broadcast %95 : i32 to vector<8x128xi32>
    %97 = arith.cmpi eq, %3, %96 : vector<8x128xi32>
    %c13_i32 = arith.constant 13 : i32
    %98 = vector.broadcast %c13_i32 : i32 to vector<8x128xi32>
    %99 = arith.select %97, %98, %94 : vector<8x128xi1>, vector<8x128xi32>
    %c12 = arith.constant 12 : index
    %100 = memref.load %arg1[%c12] : memref<32xi32, #tpu.memory_space<smem>>
    %101 = vector.broadcast %100 : i32 to vector<8x128xi32>
    %102 = arith.cmpi eq, %3, %101 : vector<8x128xi32>
    %c12_i32 = arith.constant 12 : i32
    %103 = vector.broadcast %c12_i32 : i32 to vector<8x128xi32>
    %104 = arith.select %102, %103, %99 : vector<8x128xi1>, vector<8x128xi32>
    %c11 = arith.constant 11 : index
    %105 = memref.load %arg1[%c11] : memref<32xi32, #tpu.memory_space<smem>>
    %106 = vector.broadcast %105 : i32 to vector<8x128xi32>
    %107 = arith.cmpi eq, %3, %106 : vector<8x128xi32>
    %c11_i32 = arith.constant 11 : i32
    %108 = vector.broadcast %c11_i32 : i32 to vector<8x128xi32>
    %109 = arith.select %107, %108, %104 : vector<8x128xi1>, vector<8x128xi32>
    %c10 = arith.constant 10 : index
    %110 = memref.load %arg1[%c10] : memref<32xi32, #tpu.memory_space<smem>>
    %111 = vector.broadcast %110 : i32 to vector<8x128xi32>
    %112 = arith.cmpi eq, %3, %111 : vector<8x128xi32>
    %c10_i32 = arith.constant 10 : i32
    %113 = vector.broadcast %c10_i32 : i32 to vector<8x128xi32>
    %114 = arith.select %112, %113, %109 : vector<8x128xi1>, vector<8x128xi32>
    %c9 = arith.constant 9 : index
    %115 = memref.load %arg1[%c9] : memref<32xi32, #tpu.memory_space<smem>>
    %116 = vector.broadcast %115 : i32 to vector<8x128xi32>
    %117 = arith.cmpi eq, %3, %116 : vector<8x128xi32>
    %c9_i32 = arith.constant 9 : i32
    %118 = vector.broadcast %c9_i32 : i32 to vector<8x128xi32>
    %119 = arith.select %117, %118, %114 : vector<8x128xi1>, vector<8x128xi32>
    %c8 = arith.constant 8 : index
    %120 = memref.load %arg1[%c8] : memref<32xi32, #tpu.memory_space<smem>>
    %121 = vector.broadcast %120 : i32 to vector<8x128xi32>
    %122 = arith.cmpi eq, %3, %121 : vector<8x128xi32>
    %c8_i32_0 = arith.constant 8 : i32
    %123 = vector.broadcast %c8_i32_0 : i32 to vector<8x128xi32>
    %124 = arith.select %122, %123, %119 : vector<8x128xi1>, vector<8x128xi32>
    %c7 = arith.constant 7 : index
    %125 = memref.load %arg1[%c7] : memref<32xi32, #tpu.memory_space<smem>>
    %126 = vector.broadcast %125 : i32 to vector<8x128xi32>
    %127 = arith.cmpi eq, %3, %126 : vector<8x128xi32>
    %c7_i32 = arith.constant 7 : i32
    %128 = vector.broadcast %c7_i32 : i32 to vector<8x128xi32>
    %129 = arith.select %127, %128, %124 : vector<8x128xi1>, vector<8x128xi32>
    %c6 = arith.constant 6 : index
    %130 = memref.load %arg1[%c6] : memref<32xi32, #tpu.memory_space<smem>>
    %131 = vector.broadcast %130 : i32 to vector<8x128xi32>
    %132 = arith.cmpi eq, %3, %131 : vector<8x128xi32>
    %c6_i32 = arith.constant 6 : i32
    %133 = vector.broadcast %c6_i32 : i32 to vector<8x128xi32>
    %134 = arith.select %132, %133, %129 : vector<8x128xi1>, vector<8x128xi32>
    %c5 = arith.constant 5 : index
    %135 = memref.load %arg1[%c5] : memref<32xi32, #tpu.memory_space<smem>>
    %136 = vector.broadcast %135 : i32 to vector<8x128xi32>
    %137 = arith.cmpi eq, %3, %136 : vector<8x128xi32>
    %c5_i32 = arith.constant 5 : i32
    %138 = vector.broadcast %c5_i32 : i32 to vector<8x128xi32>
    %139 = arith.select %137, %138, %134 : vector<8x128xi1>, vector<8x128xi32>
    %c4 = arith.constant 4 : index
    %140 = memref.load %arg1[%c4] : memref<32xi32, #tpu.memory_space<smem>>
    %141 = vector.broadcast %140 : i32 to vector<8x128xi32>
    %142 = arith.cmpi eq, %3, %141 : vector<8x128xi32>
    %c4_i32 = arith.constant 4 : i32
    %143 = vector.broadcast %c4_i32 : i32 to vector<8x128xi32>
    %144 = arith.select %142, %143, %139 : vector<8x128xi1>, vector<8x128xi32>
    %c3 = arith.constant 3 : index
    %145 = memref.load %arg1[%c3] : memref<32xi32, #tpu.memory_space<smem>>
    %146 = vector.broadcast %145 : i32 to vector<8x128xi32>
    %147 = arith.cmpi eq, %3, %146 : vector<8x128xi32>
    %c3_i32 = arith.constant 3 : i32
    %148 = vector.broadcast %c3_i32 : i32 to vector<8x128xi32>
    %149 = arith.select %147, %148, %144 : vector<8x128xi1>, vector<8x128xi32>
    %c2 = arith.constant 2 : index
    %150 = memref.load %arg1[%c2] : memref<32xi32, #tpu.memory_space<smem>>
    %151 = vector.broadcast %150 : i32 to vector<8x128xi32>
    %152 = arith.cmpi eq, %3, %151 : vector<8x128xi32>
    %c2_i32 = arith.constant 2 : i32
    %153 = vector.broadcast %c2_i32 : i32 to vector<8x128xi32>
    %154 = arith.select %152, %153, %149 : vector<8x128xi1>, vector<8x128xi32>
    %c1 = arith.constant 1 : index
    %155 = memref.load %arg1[%c1] : memref<32xi32, #tpu.memory_space<smem>>
    %156 = vector.broadcast %155 : i32 to vector<8x128xi32>
    %157 = arith.cmpi eq, %3, %156 : vector<8x128xi32>
    %c1_i32 = arith.constant 1 : i32
    %158 = vector.broadcast %c1_i32 : i32 to vector<8x128xi32>
    %159 = arith.select %157, %158, %154 : vector<8x128xi1>, vector<8x128xi32>
    %c0_1 = arith.constant 0 : index
    %160 = memref.load %arg1[%c0_1] : memref<32xi32, #tpu.memory_space<smem>>
    %161 = vector.broadcast %160 : i32 to vector<8x128xi32>
    %162 = arith.cmpi eq, %3, %161 : vector<8x128xi32>
    %c0_i32_2 = arith.constant 0 : i32
    %163 = vector.broadcast %c0_i32_2 : i32 to vector<8x128xi32>
    %164 = arith.select %162, %163, %159 : vector<8x128xi1>, vector<8x128xi32>
    %c32_i32_3 = arith.constant 32 : i32
    %165 = vector.broadcast %c32_i32_3 : i32 to vector<8x128xi32>
    %166 = arith.cmpi slt, %164, %165 : vector<8x128xi32>
    %c0_i32_4 = arith.constant 0 : i32
    %167 = vector.broadcast %c0_i32_4 : i32 to vector<8x128xi32>
    %168 = arith.select %166, %164, %167 : vector<8x128xi1>, vector<8x128xi32>
    %169 = arith.index_cast %1 : i32 to index
    %c0_5 = arith.constant 0 : index
    %170 = vector.load %arg3[%169, %c0_5] : memref<8x128xi32, #tpu.memory_space<vmem>>, vector<8x128xi32>
    tpu.vector_store %arg3[%169, %c0_5], %168 {strides = array<i32>} : memref<8x128xi32, #tpu.memory_space<vmem>>, vector<8x128xi32>,
    %c1_i32_6 = arith.constant 1 : i32
    return
  }
  func.func @transform_0(%arg0: i32, %arg1: memref<32xi32, #tpu.memory_space<smem>>) -> (i32, i32) {
    %c0_i32 = arith.constant 0 : i32
    %c0_i32_0 = arith.constant 0 : i32
    return %arg0, %c0_i32 : i32, i32
  }
  func.func @transform_1(%arg0: i32, %arg1: memref<32xi32, #tpu.memory_space<smem>>) -> (i32, i32) {
    %c0_i32 = arith.constant 0 : i32
    %c0_i32_0 = arith.constant 0 : i32
    return %arg0, %c0_i32 : i32, i32
  }
}

</mosaic_0001>

<llo_original>
// kernel: tpu_custom_call.1
$region0: #{tpu_custom_call.1}
  #allocation0 [shape = 'u32[]', space=smem, size = 0x4, offset = 0x4, fixed_abs, tag = 'smem constant byte address 0x4 - core index']
  #allocation1 [shape = 'u32[144,128]{1,0:T(1,128)}', space=vmem, size = 0x12000, scoped, tag = 'internal scratch']
  #allocation2 [shape = 's32[1]{0}', space=sflag, size = 0x4, scoped, tag = 'scoped memory for tpu_custom_call.1']
  #allocation3 [shape = 'u8[512]{0}', space=smem, size = 0x200, scoped, tag = 'prefetched SMEM operand 0']
  %s0 = inlined_call_operand.hbm [shape: s32[32], index: 0, kind: input, shape index: {}]
  %s1 = inlined_call_operand.hbm [shape: s32[8,128], index: 1, kind: input, shape index: {}]
  %s2 = inlined_call_operand.hbm [shape: s32[8,128], index: 2, kind: output, shape index: {}]
  %s3 = sld [smem:[#allocation0]]
  $region18: #{tpu_custom_call.1} parent=0
    _
  %s5 = ssub.s32 1, %s3
  %s6 = scalar_select 0, %s5, %s3
  %8 = dma.hbm_to_smem %s0, 16, [#allocation3], [#allocation2]
  %9 = dma.done [#allocation2], 16
  %10 = sfence
  $region1: #{tpu_custom_call.1} parent=0
    #allocation4 [shape = 'u8[4096]{0}', space=vmem, size = 0x1000, scoped, tag = 'input window, operand 1, single buffered']
    #allocation5 [shape = 's32[1]{0}', space=sflag, size = 0x4, scoped, tag = 'scoped memory for tpu_custom_call.1']
    #allocation6 [shape = 's32[1]{0}', space=sflag, size = 0x4, scoped, tag = 'scoped memory for tpu_custom_call.1']
    #allocation7 [shape = 'u8[4096]{0}', space=vmem, size = 0x1000, scoped, tag = 'output window, operand 0, single buffered']
    %11 = vsyncpa [#allocation5], 0
    %12 = vsyncpa [#allocation6], 0
    // Predicated region
    $region2: #{tpu_custom_call.1} parent=1 // pred_check
      _
    $region3: #{tpu_custom_call.1} parent=1 // pred_check_branch
      %14 = sbr.rel (0) target = $region5
    $region4: #{tpu_custom_call.1} parent=1 // pred_region
      %s16 = ssub.s32 128, 128
      %17 = vsyncadd [#allocation5], %s16
      %s19 = sshll.u32 [#allocation4], 4
      %s20 = int_to_ptr.vmem [resolvable:$true] %s19
      %22 = dma.hbm_to_vmem [thread:$0]  %s1, 128, %s20, [#allocation5]
    $region5: #{tpu_custom_call.1} parent=1 // pred_fallthru
      _
    // Predicated region
    $region6: #{tpu_custom_call.1} parent=1 // pred_check
      _
    $region7: #{tpu_custom_call.1} parent=1 // pred_check_branch
      %24 = sbr.rel (0) target = $region9
    $region8: #{tpu_custom_call.1} parent=1 // pred_region
      %25 = dma.done [#allocation5], 128
    $region9: #{tpu_custom_call.1} parent=1 // pred_fallthru
      _
    %v26 = vld [vmem:[#allocation4] sm:$0xff]
    %s27 = sld [smem:[#allocation3 + $0x1f]]
    %v28 = vstv %s27
    %vm29 = vcmp.eq.s32.totalorder %v26, %v28
    %v30 = vsel %vm29, 31, 32
    %s31 = sld [smem:[#allocation3 + $0x1e]]
    %v32 = vstv %s31
    %vm33 = vcmp.eq.s32.totalorder %v26, %v32
    %v34 = vsel %vm33, 30, %v30
    %s35 = sld [smem:[#allocation3 + $0x1d]]
    %v36 = vstv %s35
    %vm37 = vcmp.eq.s32.totalorder %v26, %v36
    %v38 = vsel %vm37, 29, %v34
    %s39 = sld [smem:[#allocation3 + $0x1c]]
    %v40 = vstv %s39
    %vm41 = vcmp.eq.s32.totalorder %v26, %v40
    %v42 = vsel %vm41, 28, %v38
    %s43 = sld [smem:[#allocation3 + $0x1b]]
    %v44 = vstv %s43
    %vm45 = vcmp.eq.s32.totalorder %v26, %v44
    %v46 = vsel %vm45, 27, %v42
    %s47 = sld [smem:[#allocation3 + $0x1a]]
    %v48 = vstv %s47
    %vm49 = vcmp.eq.s32.totalorder %v26, %v48
    %v50 = vsel %vm49, 26, %v46
    %s51 = sld [smem:[#allocation3 + $0x19]]
    %v52 = vstv %s51
    %vm53 = vcmp.eq.s32.totalorder %v26, %v52
    %v54 = vsel %vm53, 25, %v50
    %s55 = sld [smem:[#allocation3 + $0x18]]
    %v56 = vstv %s55
    %vm57 = vcmp.eq.s32.totalorder %v26, %v56
    %v58 = vsel %vm57, 24, %v54
    %s59 = sld [smem:[#allocation3 + $0x17]]
    %v60 = vstv %s59
    %vm61 = vcmp.eq.s32.totalorder %v26, %v60
    %v62 = vsel %vm61, 23, %v58
    %s63 = sld [smem:[#allocation3 + $0x16]]
    %v64 = vstv %s63
    %vm65 = vcmp.eq.s32.totalorder %v26, %v64
    %v66 = vsel %vm65, 22, %v62
    %s67 = sld [smem:[#allocation3 + $0x15]]
    %v68 = vstv %s67
    %vm69 = vcmp.eq.s32.totalorder %v26, %v68
    %v70 = vsel %vm69, 21, %v66
    %s71 = sld [smem:[#allocation3 + $0x14]]
    %v72 = vstv %s71
    %vm73 = vcmp.eq.s32.totalorder %v26, %v72
    %v74 = vsel %vm73, 20, %v70
    %s75 = sld [smem:[#allocation3 + $0x13]]
    %v76 = vstv %s75
    %vm77 = vcmp.eq.s32.totalorder %v26, %v76
    %v78 = vsel %vm77, 19, %v74
    %s79 = sld [smem:[#allocation3 + $0x12]]
    %v80 = vstv %s79
    %vm81 = vcmp.eq.s32.totalorder %v26, %v80
    %v82 = vsel %vm81, 18, %v78
    %s83 = sld [smem:[#allocation3 + $0x11]]
    %v84 = vstv %s83
    %vm85 = vcmp.eq.s32.totalorder %v26, %v84
    %v86 = vsel %vm85, 17, %v82
    %s87 = sld [smem:[#allocation3 + $0x10]]
    %v88 = vstv %s87
    %vm89 = vcmp.eq.s32.totalorder %v26, %v88
    %v90 = vsel %vm89, 16, %v86
    %s91 = sld [smem:[#allocation3 + $0xf]]
    %v92 = vstv %s91
    %vm93 = vcmp.eq.s32.totalorder %v26, %v92
    %v94 = vsel %vm93, 15, %v90
    %s95 = sld [smem:[#allocation3 + $0xe]]
    %v96 = vstv %s95
    %vm97 = vcmp.eq.s32.totalorder %v26, %v96
    %v98 = vsel %vm97, 14, %v94
    %s99 = sld [smem:[#allocation3 + $0xd]]
    %v100 = vstv %s99
    %vm101 = vcmp.eq.s32.totalorder %v26, %v100
    %v102 = vsel %vm101, 13, %v98
    %s103 = sld [smem:[#allocation3 + $0xc]]
    %v104 = vstv %s103
    %vm105 = vcmp.eq.s32.totalorder %v26, %v104
    %v106 = vsel %vm105, 12, %v102
    %s107 = sld [smem:[#allocation3 + $0xb]]
    %v108 = vstv %s107
    %vm109 = vcmp.eq.s32.totalorder %v26, %v108
    %v110 = vsel %vm109, 11, %v106
    %s111 = sld [smem:[#allocation3 + $0xa]]
    %v112 = vstv %s111
    %vm113 = vcmp.eq.s32.totalorder %v26, %v112
    %v114 = vsel %vm113, 10, %v110
    %s115 = sld [smem:[#allocation3 + $0x9]]
    %v116 = vstv %s115
    %vm117 = vcmp.eq.s32.totalorder %v26, %v116
    %v118 = vsel %vm117, 9, %v114
    %s119 = sld [smem:[#allocation3 + $0x8]]
    %v120 = vstv %s119
    %vm121 = vcmp.eq.s32.totalorder %v26, %v120
    %v122 = vsel %vm121, 8, %v118
    %s123 = sld [smem:[#allocation3 + $0x7]]
    %v124 = vstv %s123
    %vm125 = vcmp.eq.s32.totalorder %v26, %v124
    %v126 = vsel %vm125, 7, %v122
    %s127 = sld [smem:[#allocation3 + $0x6]]
    %v128 = vstv %s127
    %vm129 = vcmp.eq.s32.totalorder %v26, %v128
    %v130 = vsel %vm129, 6, %v126
    %s131 = sld [smem:[#allocation3 + $0x5]]
    %v132 = vstv %s131
    %vm133 = vcmp.eq.s32.totalorder %v26, %v132
    %v134 = vsel %vm133, 5, %v130
    %s135 = sld [smem:[#allocation3 + $0x4]]
    %v136 = vstv %s135
    %vm137 = vcmp.eq.s32.totalorder %v26, %v136
    %v138 = vsel %vm137, 4, %v134
    %s139 = sld [smem:[#allocation3 + $0x3]]
    %v140 = vstv %s139
    %vm141 = vcmp.eq.s32.totalorder %v26, %v140
    %v142 = vsel %vm141, 3, %v138
    %s143 = sld [smem:[#allocation3 + $0x2]]
    %v144 = vstv %s143
    %vm145 = vcmp.eq.s32.totalorder %v26, %v144
    %v146 = vsel %vm145, 2, %v142
    %s147 = sld [smem:[#allocation3 + $0x1]]
    %v148 = vstv %s147
    %vm149 = vcmp.eq.s32.totalorder %v26, %v148
    %v150 = vsel %vm149, 1, %v146
    %s151 = sld [smem:[#allocation3]]
    %v152 = vstv %s151
    %vm153 = vcmp.eq.s32.totalorder %v26, %v152
    %v154 = vsel %vm153, 0, %v150
    %vm155 = vcmp.lt.s32.totalorder %v154, 32
    %v156 = vsel %vm155, %v154, 0
    %157 = vst [vmem:[#allocation7] sm:$0xff] %v156
    // Predicated region
    $region10: #{tpu_custom_call.1} parent=1 // pred_check
      _
    $region11: #{tpu_custom_call.1} parent=1 // pred_check_branch
      %159 = sbr.rel (0) target = $region13
    $region12: #{tpu_custom_call.1} parent=1 // pred_region
      %s161 = ssub.s32 128, 128
      %162 = vsyncadd [#allocation6], %s161
      %s164 = sshll.u32 [#allocation7], 4
      %s165 = int_to_ptr.vmem [resolvable:$true] %s164
      %167 = dma.vmem_to_hbm [thread:$0]  %s165, 128, %s2, [#allocation6]
    $region13: #{tpu_custom_call.1} parent=1 // pred_fallthru
      _
    // Predicated region
    $region14: #{tpu_custom_call.1} parent=1 // pred_check
      _
    $region15: #{tpu_custom_call.1} parent=1 // pred_check_branch
      %169 = sbr.rel (0) target = $region17
    $region16: #{tpu_custom_call.1} parent=1 // pred_region
      %170 = dma.done [#allocation6], 128
    $region17: #{tpu_custom_call.1} parent=1 // pred_fallthru
      _
    %171 = vsyncpa [#allocation5], 1
    %172 = vsyncpa [#allocation6], 1

</llo_original>
